<compile_context>
chip_gen: v6e
topology: v6e:2x2x1
jax: 0.10.0
libtpu: 0.0.40
codegen_flags: <defaults>
</compile_context>

<pallas_src>
import jax
import jax.numpy as jnp
from jax.experimental import pallas as pl
from jax.experimental.pallas import tpu as pltpu


def _reorg_copy_kernel(x_ref, o_ref):
    # x_ref: (1, ti, 1, w_s, A, K)   o_ref: (1, ti, w_s, 1, A, K)
    # Same elements in the same order; only the position of the size-1
    # row-phase axis differs.  The actual reorg permutation is done by the
    # BlockSpec index maps / output DMA, so this is a straight copy.
    o_ref[0, :, :, 0, :, :] = x_ref[0, :, 0, :, :, :]


def reorg(x_nchw, stride, *, block_budget_bytes=2 * 1024 * 1024):
    """Pallas implementation of REORGLayer.forward (input/output in NCHW)."""
    B, C, H, W = x_nchw.shape
    s = int(stride)
    assert H % s == 0 and W % s == 0, "spatial dims must be divisible by stride"
    h_s, w_s = H // s, W // s
    dt = x_nchw.dtype
    itemsize = dt.itemsize

    # Split the per-(i, j, p) contiguous channel chunk (s*C elements, i.e. the
    # flattened (q, c) index) into (A, K).  Blocks always take the full (A, K)
    # extent -> compile-safe, and K = 128 when possible -> lane-dense stores.
    sc = s * C
    if sc % 128 == 0 and sc // 128 >= 2:
        K = 128
    else:
        K = C
    A = sc // K

    # VMEM budget: one block ~= ti * w_s * padded(A, K) elements; in + out,
    # double-buffered => ~4 blocks resident.  Keep each block small enough to
    # leave plenty of headroom on v7x's 64 MiB VMEM.
    pad_rows = -(-A // 8) * 8
    pad_lanes = -(-K // 128) * 128
    row_bytes = w_s * pad_rows * pad_lanes * itemsize
    ti = 1
    for t in range(1, h_s + 1):
        if h_s % t == 0 and t * row_bytes <= block_budget_bytes:
            ti = t
    n_h = h_s // ti

    # Layout glue required by the NCHW module contract, plus free reshapes.
    x_nhwc = jnp.transpose(x_nchw, (0, 2, 3, 1))          # (B, H, W, C)
    x_view = x_nhwc.reshape(B, h_s, s, w_s, A, K)         # free row-major view

    out_view = pl.pallas_call(
        _reorg_copy_kernel,
        out_shape=jax.ShapeDtypeStruct((B, h_s, w_s, s, A, K), dt),
        grid_spec=pltpu.PrefetchScalarGridSpec(
            num_scalar_prefetch=0,
            grid=(B, n_h, s),
            in_specs=[
                pl.BlockSpec((1, ti, 1, w_s, A, K),
                             lambda b, it, p: (b, it, p, 0, 0, 0)),
            ],
            out_specs=pl.BlockSpec((1, ti, w_s, 1, A, K),
                                   lambda b, it, p: (b, it, 0, p, 0, 0)),
        ),
        compiler_params=pltpu.CompilerParams(
            dimension_semantics=("parallel", "parallel", "parallel"),
            vmem_limit_bytes=32 * 1024 * 1024,
        ),
        cost_estimate=pl.CostEstimate(
            flops=0,
            transcendentals=0,
            bytes_accessed=2 * B * H * W * C * itemsize,
        ),
    )(x_view)

    out_r = out_view.reshape(B, h_s, w_s, s * s * C)      # free view
    # TODO(synk): the NCHW<->channels-last transposes exist only because the
    # PyTorch module is NCHW; keep the surrounding JAX model NHWC to remove
    # them (they cost as much HBM traffic as the kernel itself).
    return jnp.transpose(out_r, (0, 3, 1, 2))             # (B, s*s*C, h_s, w_s)


def reorg_reference(x, s):
    """Pure-JAX transcription of the PyTorch forward (for verification)."""
    B, C, H, W = x.shape
    h_s, w_s = H // s, W // s
    y = x.reshape(B, C, h_s, s, w_s, s).transpose(0, 1, 2, 4, 3, 5)
    y = y.reshape(B, C, h_s * w_s, s * s).transpose(0, 1, 3, 2)
    y = y.reshape(B, C, s * s, h_s, w_s).transpose(0, 2, 1, 3, 4)
    return y.reshape(B, s * s * C, h_s, w_s)


if __name__ == "__main__":
    # REORGLayer has no learnable parameters; only `stride` from __init__.
    stride = 2
    B, C, H, W = 2, 4, 16, 16

    key = jax.random.PRNGKey(0)
    x = jax.random.normal(key, (B, C, H, W), dtype=jnp.float32)

    out = jax.block_until_ready(reorg(x, stride))

    ref = reorg_reference(x, stride)
    assert out.shape == (B, stride * stride * C, H // stride, W // stride)
    assert out.dtype == x.dtype
    assert jnp.array_equal(out, ref), "Pallas REORG output mismatch vs reference"

    print("KERNEL_OK")
</pallas_src>

<mosaic_0001>
module attributes {stable_mosaic.version = 11 : i64} {
  func.func @_reorg_copy_kernel(%arg0: i32, %arg1: i32, %arg2: i32, %arg3: memref<1x8x1x8x2x4xf32, #tpu.memory_space<vmem>>, %arg4: memref<1x8x8x1x2x4xf32, #tpu.memory_space<vmem>>) attributes {dimension_semantics = [#tpu.dimension_semantics<parallel>, #tpu.dimension_semantics<parallel>, #tpu.dimension_semantics<parallel>], iteration_bounds = array<i64: 2, 1, 2>, scalar_prefetch = 0 : i64, scratch_operands = 0 : i64, tpu.core_type = #tpu.core_type<tc>, window_params = [{transform_indices = @transform_0, window_bounds = array<i64: 1, 8, 1, 8, 2, 4>}, {transform_indices = @transform_1, window_bounds = array<i64: 1, 8, 8, 1, 2, 4>}]} {
    %c0 = arith.constant 0 : index
    %c0_0 = arith.constant 0 : index
    %c0_1 = arith.constant 0 : index
    %c0_2 = arith.constant 0 : index
    %c0_3 = arith.constant 0 : index
    %c0_4 = arith.constant 0 : index
    %0 = vector.load %arg3[%c0, %c0_0, %c0_1, %c0_2, %c0_3, %c0_4] : memref<1x8x1x8x2x4xf32, #tpu.memory_space<vmem>>, vector<1x8x1x8x2x4xf32>
    %1 = vector.shape_cast %0 : vector<1x8x1x8x2x4xf32> to vector<8x8x2x4xf32>
    %c0_5 = arith.constant 0 : index
    %c0_6 = arith.constant 0 : index
    %c0_7 = arith.constant 0 : index
    %c0_8 = arith.constant 0 : index
    %c0_9 = arith.constant 0 : index
    %c0_10 = arith.constant 0 : index
    %2 = vector.load %arg4[%c0_5, %c0_6, %c0_7, %c0_8, %c0_9, %c0_10] : memref<1x8x8x1x2x4xf32, #tpu.memory_space<vmem>>, vector<1x8x8x1x2x4xf32>
    %3 = vector.shape_cast %2 : vector<1x8x8x1x2x4xf32> to vector<8x8x2x4xf32>
    %4 = vector.shape_cast %1 : vector<8x8x2x4xf32> to vector<1x8x8x1x2x4xf32>
    tpu.vector_store %arg4[%c0_5, %c0_6, %c0_7, %c0_8, %c0_9, %c0_10], %4 {strides = array<i32>} : memref<1x8x8x1x2x4xf32, #tpu.memory_space<vmem>>, vector<1x8x8x1x2x4xf32>,
    return
  }
  func.func @transform_0(%arg0: i32, %arg1: i32, %arg2: i32) -> (i32, i32, i32, i32, i32, i32) {
    %c0_i32 = arith.constant 0 : i32
    %c0_i32_0 = arith.constant 0 : i32
    %c0_i32_1 = arith.constant 0 : i32
    %c0_i32_2 = arith.constant 0 : i32
    return %arg0, %arg1, %arg2, %c0_i32, %c0_i32_0, %c0_i32_1 : i32, i32, i32, i32, i32, i32
  }
  func.func @transform_1(%arg0: i32, %arg1: i32, %arg2: i32) -> (i32, i32, i32, i32, i32, i32) {
    %c0_i32 = arith.constant 0 : i32
    %c0_i32_0 = arith.constant 0 : i32
    %c0_i32_1 = arith.constant 0 : i32
    %c0_i32_2 = arith.constant 0 : i32
    return %arg0, %arg1, %c0_i32, %arg2, %c0_i32_0, %c0_i32_1 : i32, i32, i32, i32, i32, i32
  }
}

</mosaic_0001>

<llo_original>
// kernel: tpu_custom_call.1
$region0: #{tpu_custom_call.1}
  #allocation0 [shape = 'u32[]', space=smem, size = 0x4, offset = 0x4, fixed_abs, tag = 'smem constant byte address 0x4 - core index']
  #allocation1 [shape = 'u32[144,128]{1,0:T(1,128)}', space=vmem, size = 0x12000, scoped, tag = 'internal scratch']
  %s0 = inlined_call_operand.vmem [shape: f32[2,8,2,8,2,4], index: 0, kind: input, shape index: {}]
  %s1 = inlined_call_operand.vmem [shape: f32[2,8,8,2,2,4], index: 1, kind: output, shape index: {}]
  %s2 = sld [smem:[#allocation0]]
  $region115: #{tpu_custom_call.1} parent=0
    _
  %s4 = ssub.s32 1, %s2
  %s5 = scalar_select 0, %s4, %s2
  $region1: #{tpu_custom_call.1} parent=0
    #allocation2 [shape = 'u8[131072]{0}', space=vmem, size = 0x20000, scoped, tag = 'input window, operand 0']
    #allocation3 [shape = 'u8[131072]{0}', space=vmem, size = 0x20000, scoped, tag = 'output window, operand 0']
    loop: start=0, step=1, limit=6
    $region2: #{tpu_custom_call.1} parent=1 // loop_pre_header
      _
    $region3: #{tpu_custom_call.1} parent=1 // loop_header
      %s7 = sphi 0, %s11
      %p8 = scmp.ge.s32.totalorder %s7, 6
      %s14 = sphi 0, %s33
      %s15 = sphi 0, %s29
      %s16 = sphi 0, %s25
      %s17 = sphi 0, %s14
      %s18 = sphi 0, %s15
      %s19 = sphi 0, %s16
      %s20 = sphi 0, %s17
      %s21 = sphi 0, %s18
      %s22 = sphi 0, %s19
      %s40 = sphi 0, %s42
      %s43 = sphi 0, %s40
      %s44 = sphi 0, %s43
      %s60 = sphi 0, %s44
      %s70 = sphi 0, %s72
      %s73 = sphi 0, %s70
      %s74 = sphi 0, %s73
      %s90 = sphi 0, %s74
    $region4: #{tpu_custom_call.1} parent=1 // loop_header_branch
      %10 = sbr.rel (%p8) target = $region8
    $region5: #{tpu_custom_call.1} parent=1 // loop_body
      %s12 = ssub.s32 %s7, 1
      %s13 = ssub.s32 %s7, 2
      %s23 = sadd.s32 1, %s16
      %p24 = scmp.ge.s32.totalorder %s23, 2
      %s25 = scalar_select %p24, 0, %s23
      %s26 = sadd.s32 1, %s15
      %s27 = scalar_select %p24, %s26, %s15
      %p28 = scmp.ge.s32.totalorder %s27, 1
      %s29 = scalar_select %p28, 0, %s27
      %s30 = sadd.s32 1, %s14
      %s31 = scalar_select %p28, %s30, %s14
      %p32 = scmp.ge.s32.totalorder %s31, 2
      %s33 = scalar_select %p32, 0, %s31
      %s34 = ssub.s32 %s14, %s33
      %s35 = ssub.s32 %s15, %s29
      %s36 = sor.u32 %s34, %s35
      %s37 = ssub.s32 %s16, %s25
      %s38 = sor.u32 %s36, %s37
      %p39 = scmp.eq.s32.totalorder %s38, 0
      %s41 = sadd.s32 %s40, 1
      %s42 = scalar_select %p39, %s40, %s41
      %p45 = pneg %p39
      %p46 = scmp.eq.s32.totalorder %s7, 3
      %p47 = por %p45, %p46
      %p48 = scmp.ne.s32.totalorder %s40, %s43
      %p49 = scmp.eq.s32.totalorder %s7, 0
      %p50 = por %p48, %p49
      %p51 = scmp.ne.s32.totalorder %s40, %s43
      %p52 = scmp.eq.s32.totalorder %s12, 3
      %p53 = por %p51, %p52
      %p54 = scmp.ne.s32.totalorder %s43, %s44
      %p55 = scmp.eq.s32.totalorder %s12, 0
      %p56 = por %p54, %p55
      %p57 = scmp.ne.s32.totalorder %s43, %s44
      %p58 = scmp.eq.s32.totalorder %s13, 3
      %p59 = por %p57, %p58
      %p61 = scmp.ne.s32.totalorder %s44, %s60
      %p62 = scmp.eq.s32.totalorder %s13, 0
      %p63 = por %p61, %p62
      %s64 = ssub.s32 %s14, %s33
      %s65 = ssub.s32 %s15, %s29
      %s66 = sor.u32 %s64, %s65
      %s67 = ssub.s32 %s16, %s25
      %s68 = sor.u32 %s66, %s67
      %p69 = scmp.eq.s32.totalorder %s68, 0
      %s71 = sadd.s32 %s70, 1
      %s72 = scalar_select %p69, %s70, %s71
      %p75 = pneg %p69
      %p76 = scmp.eq.s32.totalorder %s7, 3
      %p77 = por %p75, %p76
      %p78 = scmp.ne.s32.totalorder %s70, %s73
      %p79 = scmp.eq.s32.totalorder %s7, 0
      %p80 = por %p78, %p79
      %p81 = scmp.ne.s32.totalorder %s70, %s73
      %p82 = scmp.eq.s32.totalorder %s12, 3
      %p83 = por %p81, %p82
      %p84 = scmp.ne.s32.totalorder %s73, %s74
      %p85 = scmp.eq.s32.totalorder %s12, 0
      %p86 = por %p84, %p85
      %p87 = scmp.ne.s32.totalorder %s73, %s74
      %p88 = scmp.eq.s32.totalorder %s13, 3
      %p89 = por %p87, %p88
      %p91 = scmp.ne.s32.totalorder %s74, %s90
      %p92 = scmp.eq.s32.totalorder %s13, 0
      %p93 = por %p91, %p92
      %p94 = scmp.le.s32.totalorder 1, %s7
      %p95 = scmp.lt.s32.totalorder %s7, 5
      %p96 = pnand %p94, %p95
      %p97 = pneg %p96
      // Predicated region
      $region9: #{tpu_custom_call.1} parent=5 // pred_check
        _
      $region10: #{tpu_custom_call.1} parent=5 // pred_check_branch
        %99 = sbr.rel (%p96) target = $region12
      $region11: #{tpu_custom_call.1} parent=5 // pred_region
        %s100 = ssub.s32 %s7, 1
      $region12: #{tpu_custom_call.1} parent=5 // pred_fallthru
        _
      %p101 = scmp.lt.s32.totalorder %s7, 4
      // Predicated region
      $region13: #{tpu_custom_call.1} parent=5 // pred_check
        %p102 = pneg %p101
      $region14: #{tpu_custom_call.1} parent=5 // pred_check_branch
        %104 = sbr.rel (%p102) target = $region16
      $region15: #{tpu_custom_call.1} parent=5 // pred_region
        // Predicated region
        $region17: #{tpu_custom_call.1} parent=15 // pred_check
          %p105 = pneg %p50
        $region18: #{tpu_custom_call.1} parent=15 // pred_check_branch
          %107 = sbr.rel (%p105) target = $region20
        $region19: #{tpu_custom_call.1} parent=15 // pred_region
          %s108 = sand.u32 %s40, 1
          %s109 = sand.u32 %s40, 1
          %s110 = smul.addr %s109, 128
          %s111 = scalar_lea.vmem [#allocation2], %s110
          %s112 = smul.u32 8, %s15
          %s113 = smul.addr %s16, 8
          %s114 = smul.addr %s112, 16
          %s115 = sadd.s32 %s113, %s114
          %s116 = smul.addr %s14, 128
          %s117 = sadd.s32 %s115, %s116
          %s118 = smul.addr %s117, 2
          %s119 = scalar_lea.vmem %s0, %s118
          // Predicated region
          $region21: #{tpu_custom_call.1} parent=19 // pred_check
            _
          $region22: #{tpu_custom_call.1} parent=19 // pred_check_branch
            %121 = sbr.rel (0) target = $region24
          $region23: #{tpu_custom_call.1} parent=19 // pred_region
            // Predicated region
            $region25: #{tpu_custom_call.1} parent=23 // pred_check
              _
            $region26: #{tpu_custom_call.1} parent=23 // pred_check_branch
              %123 = sbr.rel target = $region28
            $region27: #{tpu_custom_call.1} parent=23 // pred_region
              // Predicated region
              $region40: #{tpu_custom_call.1} parent=27 // pred_check
                _
              $region41: #{tpu_custom_call.1} parent=27 // pred_check_branch
                %265 = sbr.rel (0) target = $region43
              $region42: #{tpu_custom_call.1} parent=27 // pred_region
                loop: start=0, step=1, limit=1
                $region44: #{tpu_custom_call.1} parent=42 // loop_pre_header
                  _
                $region45: #{tpu_custom_call.1} parent=42 // loop_header
                  %s267 = sphi 0, %s271
                  %p268 = scmp.ge.s32.totalorder %s267, 1
                  %s272 = sphi %s119, %s119
                  %s273 = sphi %s111, %s111
                $region46: #{tpu_custom_call.1} parent=42 // loop_header_branch
                  %270 = sbr.rel (%p268) target = $region50
                $region47: #{tpu_custom_call.1} parent=42 // loop_body
                  _
                $region48: #{tpu_custom_call.1} parent=42 // loop_footer
                  %s271 = sadd.s32 1, %s267
                $region49: #{tpu_custom_call.1} parent=42 // loop_footer_branch
                  %266 = sbr.rel target = $region45
                $region50: #{tpu_custom_call.1} parent=42 // loop_exit
                  _
                %s275 = ssub.s32 4, 1
                loop: start=0, step=1, limit=1
                $region51: #{tpu_custom_call.1} parent=42 // loop_pre_header
                  _
                $region52: #{tpu_custom_call.1} parent=42 // loop_header
                  %s277 = sphi 0, %s281
                  %p278 = scmp.ge.s32.totalorder %s277, 1
                  %s282 = sphi %s119, %s119
                  %s283 = sphi %s111, %s111
                $region53: #{tpu_custom_call.1} parent=42 // loop_header_branch
                  %280 = sbr.rel (%p278) target = $region57
                $region54: #{tpu_custom_call.1} parent=42 // loop_body
                  %v284 = vld [vmem:[%s282] sm:%s275]
                  %285 = vst [vmem:[%s283] sm:%s275] %v284
                  %v286 = vld [vmem:[%s282 + $0x2] sm:%s275]
                  %287 = vst [vmem:[%s283 + $0x2] sm:%s275] %v286
                  %v288 = vld [vmem:[%s282 + $0x4] sm:%s275]
                  %289 = vst [vmem:[%s283 + $0x4] sm:%s275] %v288
                  %v290 = vld [vmem:[%s282 + $0x6] sm:%s275]
                  %291 = vst [vmem:[%s283 + $0x6] sm:%s275] %v290
                  %v292 = vld [vmem:[%s282 + $0x8] sm:%s275]
                  %293 = vst [vmem:[%s283 + $0x8] sm:%s275] %v292
                  %v294 = vld [vmem:[%s282 + $0xa] sm:%s275]
                  %295 = vst [vmem:[%s283 + $0xa] sm:%s275] %v294
                  %v296 = vld [vmem:[%s282 + $0xc] sm:%s275]
                  %297 = vst [vmem:[%s283 + $0xc] sm:%s275] %v296
                  %v298 = vld [vmem:[%s282 + $0xe] sm:%s275]
                  %299 = vst [vmem:[%s283 + $0xe] sm:%s275] %v298
                  %v300 = vld [vmem:[%s282 + $0x20] sm:%s275]
                  %301 = vst [vmem:[%s283 + $0x10] sm:%s275] %v300
                  %v302 = vld [vmem:[%s282 + $0x22] sm:%s275]
                  %303 = vst [vmem:[%s283 + $0x12] sm:%s275] %v302
                  %v304 = vld [vmem:[%s282 + $0x24] sm:%s275]
                  %305 = vst [vmem:[%s283 + $0x14] sm:%s275] %v304
                  %v306 = vld [vmem:[%s282 + $0x26] sm:%s275]
                  %307 = vst [vmem:[%s283 + $0x16] sm:%s275] %v306
                  %v308 = vld [vmem:[%s282 + $0x28] sm:%s275]
                  %309 = vst [vmem:[%s283 + $0x18] sm:%s275] %v308
                  %v310 = vld [vmem:[%s282 + $0x2a] sm:%s275]
                  %311 = vst [vmem:[%s283 + $0x1a] sm:%s275] %v310
                  %v312 = vld [vmem:[%s282 + $0x2c] sm:%s275]
                  %313 = vst [vmem:[%s283 + $0x1c] sm:%s275] %v312
                  %v314 = vld [vmem:[%s282 + $0x2e] sm:%s275]
                  %315 = vst [vmem:[%s283 + $0x1e] sm:%s275] %v314
                  %v316 = vld [vmem:[%s282 + $0x40] sm:%s275]
                  %317 = vst [vmem:[%s283 + $0x20] sm:%s275] %v316
                  %v318 = vld [vmem:[%s282 + $0x42] sm:%s275]
                  %319 = vst [vmem:[%s283 + $0x22] sm:%s275] %v318
                  %v320 = vld [vmem:[%s282 + $0x44] sm:%s275]
                  %321 = vst [vmem:[%s283 + $0x24] sm:%s275] %v320
                  %v322 = vld [vmem:[%s282 + $0x46] sm:%s275]
                  %323 = vst [vmem:[%s283 + $0x26] sm:%s275] %v322
                  %v324 = vld [vmem:[%s282 + $0x48] sm:%s275]
                  %325 = vst [vmem:[%s283 + $0x28] sm:%s275] %v324
                  %v326 = vld [vmem:[%s282 + $0x4a] sm:%s275]
                  %327 = vst [vmem:[%s283 + $0x2a] sm:%s275] %v326
                  %v328 = vld [vmem:[%s282 + $0x4c] sm:%s275]
                  %329 = vst [vmem:[%s283 + $0x2c] sm:%s275] %v328
                  %v330 = vld [vmem:[%s282 + $0x4e] sm:%s275]
                  %331 = vst [vmem:[%s283 + $0x2e] sm:%s275] %v330
                  %v332 = vld [vmem:[%s282 + $0x60] sm:%s275]
                  %333 = vst [vmem:[%s283 + $0x30] sm:%s275] %v332
                  %v334 = vld [vmem:[%s282 + $0x62] sm:%s275]
                  %335 = vst [vmem:[%s283 + $0x32] sm:%s275] %v334
                  %v336 = vld [vmem:[%s282 + $0x64] sm:%s275]
                  %337 = vst [vmem:[%s283 + $0x34] sm:%s275] %v336
                  %v338 = vld [vmem:[%s282 + $0x66] sm:%s275]
                  %339 = vst [vmem:[%s283 + $0x36] sm:%s275] %v338
                  %v340 = vld [vmem:[%s282 + $0x68] sm:%s275]
                  %341 = vst [vmem:[%s283 + $0x38] sm:%s275] %v340
                  %v342 = vld [vmem:[%s282 + $0x6a] sm:%s275]
                  %343 = vst [vmem:[%s283 + $0x3a] sm:%s275] %v342
                  %v344 = vld [vmem:[%s282 + $0x6c] sm:%s275]
                  %345 = vst [vmem:[%s283 + $0x3c] sm:%s275] %v344
                  %v346 = vld [vmem:[%s282 + $0x6e] sm:%s275]
                  %347 = vst [vmem:[%s283 + $0x3e] sm:%s275] %v346
                  %v348 = vld [vmem:[%s282 + $0x80] sm:%s275]
                  %349 = vst [vmem:[%s283 + $0x40] sm:%s275] %v348
                  %v350 = vld [vmem:[%s282 + $0x82] sm:%s275]
                  %351 = vst [vmem:[%s283 + $0x42] sm:%s275] %v350
                  %v352 = vld [vmem:[%s282 + $0x84] sm:%s275]
                  %353 = vst [vmem:[%s283 + $0x44] sm:%s275] %v352
                  %v354 = vld [vmem:[%s282 + $0x86] sm:%s275]
                  %355 = vst [vmem:[%s283 + $0x46] sm:%s275] %v354
                  %v356 = vld [vmem:[%s282 + $0x88] sm:%s275]
                  %357 = vst [vmem:[%s283 + $0x48] sm:%s275] %v356
                  %v358 = vld [vmem:[%s282 + $0x8a] sm:%s275]
                  %359 = vst [vmem:[%s283 + $0x4a] sm:%s275] %v358
                  %v360 = vld [vmem:[%s282 + $0x8c] sm:%s275]
                  %361 = vst [vmem:[%s283 + $0x4c] sm:%s275] %v360
                  %v362 = vld [vmem:[%s282 + $0x8e] sm:%s275]
                  %363 = vst [vmem:[%s283 + $0x4e] sm:%s275] %v362
                  %v364 = vld [vmem:[%s282 + $0xa0] sm:%s275]
                  %365 = vst [vmem:[%s283 + $0x50] sm:%s275] %v364
                  %v366 = vld [vmem:[%s282 + $0xa2] sm:%s275]
                  %367 = vst [vmem:[%s283 + $0x52] sm:%s275] %v366
                  %v368 = vld [vmem:[%s282 + $0xa4] sm:%s275]
                  %369 = vst [vmem:[%s283 + $0x54] sm:%s275] %v368
                  %v370 = vld [vmem:[%s282 + $0xa6] sm:%s275]
                  %371 = vst [vmem:[%s283 + $0x56] sm:%s275] %v370
                  %v372 = vld [vmem:[%s282 + $0xa8] sm:%s275]
                  %373 = vst [vmem:[%s283 + $0x58] sm:%s275] %v372
                  %v374 = vld [vmem:[%s282 + $0xaa] sm:%s275]
                  %375 = vst [vmem:[%s283 + $0x5a] sm:%s275] %v374
                  %v376 = vld [vmem:[%s282 + $0xac] sm:%s275]
                  %377 = vst [vmem:[%s283 + $0x5c] sm:%s275] %v376
                  %v378 = vld [vmem:[%s282 + $0xae] sm:%s275]
                  %379 = vst [vmem:[%s283 + $0x5e] sm:%s275] %v378
                  %v380 = vld [vmem:[%s282 + $0xc0] sm:%s275]
                  %381 = vst [vmem:[%s283 + $0x60] sm:%s275] %v380
                  %v382 = vld [vmem:[%s282 + $0xc2] sm:%s275]
                  %383 = vst [vmem:[%s283 + $0x62] sm:%s275] %v382
                  %v384 = vld [vmem:[%s282 + $0xc4] sm:%s275]
                  %385 = vst [vmem:[%s283 + $0x64] sm:%s275] %v384
                  %v386 = vld [vmem:[%s282 + $0xc6] sm:%s275]
                  %387 = vst [vmem:[%s283 + $0x66] sm:%s275] %v386
                  %v388 = vld [vmem:[%s282 + $0xc8] sm:%s275]
                  %389 = vst [vmem:[%s283 + $0x68] sm:%s275] %v388
                  %v390 = vld [vmem:[%s282 + $0xca] sm:%s275]
                  %391 = vst [vmem:[%s283 + $0x6a] sm:%s275] %v390
                  %v392 = vld [vmem:[%s282 + $0xcc] sm:%s275]
                  %393 = vst [vmem:[%s283 + $0x6c] sm:%s275] %v392
                  %v394 = vld [vmem:[%s282 + $0xce] sm:%s275]
                  %395 = vst [vmem:[%s283 + $0x6e] sm:%s275] %v394
                  %v396 = vld [vmem:[%s282 + $0xe0] sm:%s275]
                  %397 = vst [vmem:[%s283 + $0x70] sm:%s275] %v396
                  %v398 = vld [vmem:[%s282 + $0xe2] sm:%s275]
                  %399 = vst [vmem:[%s283 + $0x72] sm:%s275] %v398
                  %v400 = vld [vmem:[%s282 + $0xe4] sm:%s275]
                  %401 = vst [vmem:[%s283 + $0x74] sm:%s275] %v400
                  %v402 = vld [vmem:[%s282 + $0xe6] sm:%s275]
                  %403 = vst [vmem:[%s283 + $0x76] sm:%s275] %v402
                  %v404 = vld [vmem:[%s282 + $0xe8] sm:%s275]
                  %405 = vst [vmem:[%s283 + $0x78] sm:%s275] %v404
                  %v406 = vld [vmem:[%s282 + $0xea] sm:%s275]
                  %407 = vst [vmem:[%s283 + $0x7a] sm:%s275] %v406
                  %v408 = vld [vmem:[%s282 + $0xec] sm:%s275]
                  %409 = vst [vmem:[%s283 + $0x7c] sm:%s275] %v408
                  %v410 = vld [vmem:[%s282 + $0xee] sm:%s275]
                  %411 = vst [vmem:[%s283 + $0x7e] sm:%s275] %v410
                $region55: #{tpu_custom_call.1} parent=42 // loop_footer
                  %s281 = sadd.s32 1, %s277
                $region56: #{tpu_custom_call.1} parent=42 // loop_footer_branch
                  %276 = sbr.rel target = $region52
                $region57: #{tpu_custom_call.1} parent=42 // loop_exit
                  _
              $region43: #{tpu_custom_call.1} parent=27 // pred_fallthru
                _
            $region28: #{tpu_custom_call.1} parent=23 // pred_fallthru
              _
            // Predicated region
            $region29: #{tpu_custom_call.1} parent=23 // pred_check
              _
            $region30: #{tpu_custom_call.1} parent=23 // pred_check_branch
              %125 = sbr.rel (0) target = $region32
            $region31: #{tpu_custom_call.1} parent=23 // pred_region
              %s127 = ssub.s32 4, 1
              loop: start=0, step=1, limit=1
              $region33: #{tpu_custom_call.1} parent=31 // loop_pre_header
                _
              $region34: #{tpu_custom_call.1} parent=31 // loop_header
                %s129 = sphi 0, %s133
                %p130 = scmp.ge.s32.totalorder %s129, 1
                %s134 = sphi %s119, %s119
                %s135 = sphi %s111, %s111
              $region35: #{tpu_custom_call.1} parent=31 // loop_header_branch
                %132 = sbr.rel (%p130) target = $region39
              $region36: #{tpu_custom_call.1} parent=31 // loop_body
                %v136 = vld [vmem:[%s134] sm:%s127]
                %137 = vst [vmem:[%s135] sm:%s127] %v136
                %v138 = vld [vmem:[%s134 + $0x2] sm:%s127]
                %139 = vst [vmem:[%s135 + $0x2] sm:%s127] %v138
                %v140 = vld [vmem:[%s134 + $0x4] sm:%s127]
                %141 = vst [vmem:[%s135 + $0x4] sm:%s127] %v140
                %v142 = vld [vmem:[%s134 + $0x6] sm:%s127]
                %143 = vst [vmem:[%s135 + $0x6] sm:%s127] %v142
                %v144 = vld [vmem:[%s134 + $0x8] sm:%s127]
                %145 = vst [vmem:[%s135 + $0x8] sm:%s127] %v144
                %v146 = vld [vmem:[%s134 + $0xa] sm:%s127]
                %147 = vst [vmem:[%s135 + $0xa] sm:%s127] %v146
                %v148 = vld [vmem:[%s134 + $0xc] sm:%s127]
                %149 = vst [vmem:[%s135 + $0xc] sm:%s127] %v148
                %v150 = vld [vmem:[%s134 + $0xe] sm:%s127]
                %151 = vst [vmem:[%s135 + $0xe] sm:%s127] %v150
                %v152 = vld [vmem:[%s134 + $0x20] sm:%s127]
                %153 = vst [vmem:[%s135 + $0x10] sm:%s127] %v152
                %v154 = vld [vmem:[%s134 + $0x22] sm:%s127]
                %155 = vst [vmem:[%s135 + $0x12] sm:%s127] %v154
                %v156 = vld [vmem:[%s134 + $0x24] sm:%s127]
                %157 = vst [vmem:[%s135 + $0x14] sm:%s127] %v156
                %v158 = vld [vmem:[%s134 + $0x26] sm:%s127]
                %159 = vst [vmem:[%s135 + $0x16] sm:%s127] %v158
                %v160 = vld [vmem:[%s134 + $0x28] sm:%s127]
                %161 = vst [vmem:[%s135 + $0x18] sm:%s127] %v160
                %v162 = vld [vmem:[%s134 + $0x2a] sm:%s127]
                %163 = vst [vmem:[%s135 + $0x1a] sm:%s127] %v162
                %v164 = vld [vmem:[%s134 + $0x2c] sm:%s127]
                %165 = vst [vmem:[%s135 + $0x1c] sm:%s127] %v164
                %v166 = vld [vmem:[%s134 + $0x2e] sm:%s127]
                %167 = vst [vmem:[%s135 + $0x1e] sm:%s127] %v166
                %v168 = vld [vmem:[%s134 + $0x40] sm:%s127]
                %169 = vst [vmem:[%s135 + $0x20] sm:%s127] %v168
                %v170 = vld [vmem:[%s134 + $0x42] sm:%s127]
                %171 = vst [vmem:[%s135 + $0x22] sm:%s127] %v170
                %v172 = vld [vmem:[%s134 + $0x44] sm:%s127]
                %173 = vst [vmem:[%s135 + $0x24] sm:%s127] %v172
                %v174 = vld [vmem:[%s134 + $0x46] sm:%s127]
                %175 = vst [vmem:[%s135 + $0x26] sm:%s127] %v174
                %v176 = vld [vmem:[%s134 + $0x48] sm:%s127]
                %177 = vst [vmem:[%s135 + $0x28] sm:%s127] %v176
                %v178 = vld [vmem:[%s134 + $0x4a] sm:%s127]
                %179 = vst [vmem:[%s135 + $0x2a] sm:%s127] %v178
                %v180 = vld [vmem:[%s134 + $0x4c] sm:%s127]
                %181 = vst [vmem:[%s135 + $0x2c] sm:%s127] %v180
                %v182 = vld [vmem:[%s134 + $0x4e] sm:%s127]
                %183 = vst [vmem:[%s135 + $0x2e] sm:%s127] %v182
                %v184 = vld [vmem:[%s134 + $0x60] sm:%s127]
                %185 = vst [vmem:[%s135 + $0x30] sm:%s127] %v184
                %v186 = vld [vmem:[%s134 + $0x62] sm:%s127]
                %187 = vst [vmem:[%s135 + $0x32] sm:%s127] %v186
                %v188 = vld [vmem:[%s134 + $0x64] sm:%s127]
                %189 = vst [vmem:[%s135 + $0x34] sm:%s127] %v188
                %v190 = vld [vmem:[%s134 + $0x66] sm:%s127]
                %191 = vst [vmem:[%s135 + $0x36] sm:%s127] %v190
                %v192 = vld [vmem:[%s134 + $0x68] sm:%s127]
                %193 = vst [vmem:[%s135 + $0x38] sm:%s127] %v192
                %v194 = vld [vmem:[%s134 + $0x6a] sm:%s127]
                %195 = vst [vmem:[%s135 + $0x3a] sm:%s127] %v194
                %v196 = vld [vmem:[%s134 + $0x6c] sm:%s127]
                %197 = vst [vmem:[%s135 + $0x3c] sm:%s127] %v196
                %v198 = vld [vmem:[%s134 + $0x6e] sm:%s127]
                %199 = vst [vmem:[%s135 + $0x3e] sm:%s127] %v198
                %v200 = vld [vmem:[%s134 + $0x80] sm:%s127]
                %201 = vst [vmem:[%s135 + $0x40] sm:%s127] %v200
                %v202 = vld [vmem:[%s134 + $0x82] sm:%s127]
                %203 = vst [vmem:[%s135 + $0x42] sm:%s127] %v202
                %v204 = vld [vmem:[%s134 + $0x84] sm:%s127]
                %205 = vst [vmem:[%s135 + $0x44] sm:%s127] %v204
                %v206 = vld [vmem:[%s134 + $0x86] sm:%s127]
                %207 = vst [vmem:[%s135 + $0x46] sm:%s127] %v206
                %v208 = vld [vmem:[%s134 + $0x88] sm:%s127]
                %209 = vst [vmem:[%s135 + $0x48] sm:%s127] %v208
                %v210 = vld [vmem:[%s134 + $0x8a] sm:%s127]
                %211 = vst [vmem:[%s135 + $0x4a] sm:%s127] %v210
                %v212 = vld [vmem:[%s134 + $0x8c] sm:%s127]
                %213 = vst [vmem:[%s135 + $0x4c] sm:%s127] %v212
                %v214 = vld [vmem:[%s134 + $0x8e] sm:%s127]
                %215 = vst [vmem:[%s135 + $0x4e] sm:%s127] %v214
                %v216 = vld [vmem:[%s134 + $0xa0] sm:%s127]
                %217 = vst [vmem:[%s135 + $0x50] sm:%s127] %v216
                %v218 = vld [vmem:[%s134 + $0xa2] sm:%s127]
                %219 = vst [vmem:[%s135 + $0x52] sm:%s127] %v218
                %v220 = vld [vmem:[%s134 + $0xa4] sm:%s127]
                %221 = vst [vmem:[%s135 + $0x54] sm:%s127] %v220
                %v222 = vld [vmem:[%s134 + $0xa6] sm:%s127]
                %223 = vst [vmem:[%s135 + $0x56] sm:%s127] %v222
                %v224 = vld [vmem:[%s134 + $0xa8] sm:%s127]
                %225 = vst [vmem:[%s135 + $0x58] sm:%s127] %v224
                %v226 = vld [vmem:[%s134 + $0xaa] sm:%s127]
                %227 = vst [vmem:[%s135 + $0x5a] sm:%s127] %v226
                %v228 = vld [vmem:[%s134 + $0xac] sm:%s127]
                %229 = vst [vmem:[%s135 + $0x5c] sm:%s127] %v228
                %v230 = vld [vmem:[%s134 + $0xae] sm:%s127]
                %231 = vst [vmem:[%s135 + $0x5e] sm:%s127] %v230
                %v232 = vld [vmem:[%s134 + $0xc0] sm:%s127]
                %233 = vst [vmem:[%s135 + $0x60] sm:%s127] %v232
                %v234 = vld [vmem:[%s134 + $0xc2] sm:%s127]
                %235 = vst [vmem:[%s135 + $0x62] sm:%s127] %v234
                %v236 = vld [vmem:[%s134 + $0xc4] sm:%s127]
                %237 = vst [vmem:[%s135 + $0x64] sm:%s127] %v236
                %v238 = vld [vmem:[%s134 + $0xc6] sm:%s127]
                %239 = vst [vmem:[%s135 + $0x66] sm:%s127] %v238
                %v240 = vld [vmem:[%s134 + $0xc8] sm:%s127]
                %241 = vst [vmem:[%s135 + $0x68] sm:%s127] %v240
                %v242 = vld [vmem:[%s134 + $0xca] sm:%s127]
                %243 = vst [vmem:[%s135 + $0x6a] sm:%s127] %v242
                %v244 = vld [vmem:[%s134 + $0xcc] sm:%s127]
                %245 = vst [vmem:[%s135 + $0x6c] sm:%s127] %v244
                %v246 = vld [vmem:[%s134 + $0xce] sm:%s127]
                %247 = vst [vmem:[%s135 + $0x6e] sm:%s127] %v246
                %v248 = vld [vmem:[%s134 + $0xe0] sm:%s127]
                %249 = vst [vmem:[%s135 + $0x70] sm:%s127] %v248
                %v250 = vld [vmem:[%s134 + $0xe2] sm:%s127]
                %251 = vst [vmem:[%s135 + $0x72] sm:%s127] %v250
                %v252 = vld [vmem:[%s134 + $0xe4] sm:%s127]
                %253 = vst [vmem:[%s135 + $0x74] sm:%s127] %v252
                %v254 = vld [vmem:[%s134 + $0xe6] sm:%s127]
                %255 = vst [vmem:[%s135 + $0x76] sm:%s127] %v254
                %v256 = vld [vmem:[%s134 + $0xe8] sm:%s127]
                %257 = vst [vmem:[%s135 + $0x78] sm:%s127] %v256
                %v258 = vld [vmem:[%s134 + $0xea] sm:%s127]
                %259 = vst [vmem:[%s135 + $0x7a] sm:%s127] %v258
                %v260 = vld [vmem:[%s134 + $0xec] sm:%s127]
                %261 = vst [vmem:[%s135 + $0x7c] sm:%s127] %v260
                %v262 = vld [vmem:[%s134 + $0xee] sm:%s127]
                %263 = vst [vmem:[%s135 + $0x7e] sm:%s127] %v262
              $region37: #{tpu_custom_call.1} parent=31 // loop_footer
                %s133 = sadd.s32 1, %s129
              $region38: #{tpu_custom_call.1} parent=31 // loop_footer_branch
                %128 = sbr.rel target = $region34
              $region39: #{tpu_custom_call.1} parent=31 // loop_exit
                _
            $region32: #{tpu_custom_call.1} parent=23 // pred_fallthru
              _
          $region24: #{tpu_custom_call.1} parent=19 // pred_fallthru
            _
          %412 = vnop
        $region20: #{tpu_custom_call.1} parent=15 // pred_fallthru
          _
      $region16: #{tpu_custom_call.1} parent=5 // pred_fallthru
        _
      %p413 = scmp.le.s32.totalorder 1, %s7
      %p414 = scmp.lt.s32.totalorder %s7, 5
      %p415 = pnand %p413, %p414
      %p416 = pneg %p415
      // Predicated region
      $region58: #{tpu_custom_call.1} parent=5 // pred_check
        _
      $region59: #{tpu_custom_call.1} parent=5 // pred_check_branch
        %418 = sbr.rel (%p415) target = $region61
      $region60: #{tpu_custom_call.1} parent=5 // pred_region
        %s419 = ssub.s32 %s7, 1
        %s420 = sand.u32 %s43, 1
        %s421 = sand.u32 %s43, 1
        %s422 = smul.addr %s421, 128
        %s423 = scalar_lea.vmem [#allocation2], %s422
        // Predicated region
        $region62: #{tpu_custom_call.1} parent=60 // pred_check
          %p424 = pneg %p56
        $region63: #{tpu_custom_call.1} parent=60 // pred_check_branch
          %426 = sbr.rel (%p424) target = $region65
        $region64: #{tpu_custom_call.1} parent=60 // pred_region
          _
        $region65: #{tpu_custom_call.1} parent=60 // pred_fallthru
          _
        %s427 = sand.u32 %s43, 1
        %s428 = sand.u32 %s43, 1
        %s429 = smul.addr %s428, 128
        %s430 = scalar_lea.vmem [#allocation2], %s429
        %p431 = pneg %p56
        %p432 = pneg %p53
        %p433 = pneg %p86
        %p434 = pneg %p83
        %s435 = sand.u32 %s73, 1
        %s436 = sand.u32 %s73, 1
        %s437 = smul.addr %s436, 128
        %s438 = scalar_lea.vmem [#allocation3], %s437
        %s439 = smul.u32 8, %s18
        %s440 = smul.u32 8, %s18
        %v441 = vld [vmem:[%s423] sm:$0x3]
        %v442 = vld [vmem:[%s423 + $0x2] sm:$0x3]
        %v443 = vld [vmem:[%s423 + $0x4] sm:$0x3]
        %v444 = vld [vmem:[%s423 + $0x6] sm:$0x3]
        %v445 = vld [vmem:[%s423 + $0x8] sm:$0x3]
        %v446 = vld [vmem:[%s423 + $0xa] sm:$0x3]
        %v447 = vld [vmem:[%s423 + $0xc] sm:$0x3]
        %v448 = vld [vmem:[%s423 + $0xe] sm:$0x3]
        %v449 = vld [vmem:[%s423 + $0x10] sm:$0x3]
        %v450 = vld [vmem:[%s423 + $0x12] sm:$0x3]
        %v451 = vld [vmem:[%s423 + $0x14] sm:$0x3]
        %v452 = vld [vmem:[%s423 + $0x16] sm:$0x3]
        %v453 = vld [vmem:[%s423 + $0x18] sm:$0x3]
        %v454 = vld [vmem:[%s423 + $0x1a] sm:$0x3]
        %v455 = vld [vmem:[%s423 + $0x1c] sm:$0x3]
        %v456 = vld [vmem:[%s423 + $0x1e] sm:$0x3]
        %v457 = vld [vmem:[%s423 + $0x20] sm:$0x3]
        %v458 = vld [vmem:[%s423 + $0x22] sm:$0x3]
        %v459 = vld [vmem:[%s423 + $0x24] sm:$0x3]
        %v460 = vld [vmem:[%s423 + $0x26] sm:$0x3]
        %v461 = vld [vmem:[%s423 + $0x28] sm:$0x3]
        %v462 = vld [vmem:[%s423 + $0x2a] sm:$0x3]
        %v463 = vld [vmem:[%s423 + $0x2c] sm:$0x3]
        %v464 = vld [vmem:[%s423 + $0x2e] sm:$0x3]
        %v465 = vld [vmem:[%s423 + $0x30] sm:$0x3]
        %v466 = vld [vmem:[%s423 + $0x32] sm:$0x3]
        %v467 = vld [vmem:[%s423 + $0x34] sm:$0x3]
        %v468 = vld [vmem:[%s423 + $0x36] sm:$0x3]
        %v469 = vld [vmem:[%s423 + $0x38] sm:$0x3]
        %v470 = vld [vmem:[%s423 + $0x3a] sm:$0x3]
        %v471 = vld [vmem:[%s423 + $0x3c] sm:$0x3]
        %v472 = vld [vmem:[%s423 + $0x3e] sm:$0x3]
        %v473 = vld [vmem:[%s423 + $0x40] sm:$0x3]
        %v474 = vld [vmem:[%s423 + $0x42] sm:$0x3]
        %v475 = vld [vmem:[%s423 + $0x44] sm:$0x3]
        %v476 = vld [vmem:[%s423 + $0x46] sm:$0x3]
        %v477 = vld [vmem:[%s423 + $0x48] sm:$0x3]
        %v478 = vld [vmem:[%s423 + $0x4a] sm:$0x3]
        %v479 = vld [vmem:[%s423 + $0x4c] sm:$0x3]
        %v480 = vld [vmem:[%s423 + $0x4e] sm:$0x3]
        %v481 = vld [vmem:[%s423 + $0x50] sm:$0x3]
        %v482 = vld [vmem:[%s423 + $0x52] sm:$0x3]
        %v483 = vld [vmem:[%s423 + $0x54] sm:$0x3]
        %v484 = vld [vmem:[%s423 + $0x56] sm:$0x3]
        %v485 = vld [vmem:[%s423 + $0x58] sm:$0x3]
        %v486 = vld [vmem:[%s423 + $0x5a] sm:$0x3]
        %v487 = vld [vmem:[%s423 + $0x5c] sm:$0x3]
        %v488 = vld [vmem:[%s423 + $0x5e] sm:$0x3]
        %v489 = vld [vmem:[%s423 + $0x60] sm:$0x3]
        %v490 = vld [vmem:[%s423 + $0x62] sm:$0x3]
        %v491 = vld [vmem:[%s423 + $0x64] sm:$0x3]
        %v492 = vld [vmem:[%s423 + $0x66] sm:$0x3]
        %v493 = vld [vmem:[%s423 + $0x68] sm:$0x3]
        %v494 = vld [vmem:[%s423 + $0x6a] sm:$0x3]
        %v495 = vld [vmem:[%s423 + $0x6c] sm:$0x3]
        %v496 = vld [vmem:[%s423 + $0x6e] sm:$0x3]
        %v497 = vld [vmem:[%s423 + $0x70] sm:$0x3]
        %v498 = vld [vmem:[%s423 + $0x72] sm:$0x3]
        %v499 = vld [vmem:[%s423 + $0x74] sm:$0x3]
        %v500 = vld [vmem:[%s423 + $0x76] sm:$0x3]
        %v501 = vld [vmem:[%s423 + $0x78] sm:$0x3]
        %v502 = vld [vmem:[%s423 + $0x7a] sm:$0x3]
        %v503 = vld [vmem:[%s423 + $0x7c] sm:$0x3]
        %v504 = vld [vmem:[%s423 + $0x7e] sm:$0x3]
        %vm505 = vcmask 25600
        %506 = vst.msk [vmem:[%s438] sm:$0x3] %vm505, %v441
        %507 = vst.msk [vmem:[%s438 + $0x2] sm:$0x3] %vm505, %v442
        %508 = vst.msk [vmem:[%s438 + $0x4] sm:$0x3] %vm505, %v443
        %509 = vst.msk [vmem:[%s438 + $0x6] sm:$0x3] %vm505, %v444
        %510 = vst.msk [vmem:[%s438 + $0x8] sm:$0x3] %vm505, %v445
        %511 = vst.msk [vmem:[%s438 + $0xa] sm:$0x3] %vm505, %v446
        %512 = vst.msk [vmem:[%s438 + $0xc] sm:$0x3] %vm505, %v447
        %513 = vst.msk [vmem:[%s438 + $0xe] sm:$0x3] %vm505, %v448
        %514 = vst.msk [vmem:[%s438 + $0x10] sm:$0x3] %vm505, %v449
        %515 = vst.msk [vmem:[%s438 + $0x12] sm:$0x3] %vm505, %v450
        %516 = vst.msk [vmem:[%s438 + $0x14] sm:$0x3] %vm505, %v451
        %517 = vst.msk [vmem:[%s438 + $0x16] sm:$0x3] %vm505, %v452
        %518 = vst.msk [vmem:[%s438 + $0x18] sm:$0x3] %vm505, %v453
        %519 = vst.msk [vmem:[%s438 + $0x1a] sm:$0x3] %vm505, %v454
        %520 = vst.msk [vmem:[%s438 + $0x1c] sm:$0x3] %vm505, %v455
        %521 = vst.msk [vmem:[%s438 + $0x1e] sm:$0x3] %vm505, %v456
        %522 = vst.msk [vmem:[%s438 + $0x20] sm:$0x3] %vm505, %v457
        %523 = vst.msk [vmem:[%s438 + $0x22] sm:$0x3] %vm505, %v458
        %524 = vst.msk [vmem:[%s438 + $0x24] sm:$0x3] %vm505, %v459
        %525 = vst.msk [vmem:[%s438 + $0x26] sm:$0x3] %vm505, %v460
        %526 = vst.msk [vmem:[%s438 + $0x28] sm:$0x3] %vm505, %v461
        %527 = vst.msk [vmem:[%s438 + $0x2a] sm:$0x3] %vm505, %v462
        %528 = vst.msk [vmem:[%s438 + $0x2c] sm:$0x3] %vm505, %v463
        %529 = vst.msk [vmem:[%s438 + $0x2e] sm:$0x3] %vm505, %v464
        %530 = vst.msk [vmem:[%s438 + $0x30] sm:$0x3] %vm505, %v465
        %531 = vst.msk [vmem:[%s438 + $0x32] sm:$0x3] %vm505, %v466
        %532 = vst.msk [vmem:[%s438 + $0x34] sm:$0x3] %vm505, %v467
        %533 = vst.msk [vmem:[%s438 + $0x36] sm:$0x3] %vm505, %v468
        %534 = vst.msk [vmem:[%s438 + $0x38] sm:$0x3] %vm505, %v469
        %535 = vst.msk [vmem:[%s438 + $0x3a] sm:$0x3] %vm505, %v470
        %536 = vst.msk [vmem:[%s438 + $0x3c] sm:$0x3] %vm505, %v471
        %537 = vst.msk [vmem:[%s438 + $0x3e] sm:$0x3] %vm505, %v472
        %538 = vst.msk [vmem:[%s438 + $0x40] sm:$0x3] %vm505, %v473
        %539 = vst.msk [vmem:[%s438 + $0x42] sm:$0x3] %vm505, %v474
        %540 = vst.msk [vmem:[%s438 + $0x44] sm:$0x3] %vm505, %v475
        %541 = vst.msk [vmem:[%s438 + $0x46] sm:$0x3] %vm505, %v476
        %542 = vst.msk [vmem:[%s438 + $0x48] sm:$0x3] %vm505, %v477
        %543 = vst.msk [vmem:[%s438 + $0x4a] sm:$0x3] %vm505, %v478
        %544 = vst.msk [vmem:[%s438 + $0x4c] sm:$0x3] %vm505, %v479
        %545 = vst.msk [vmem:[%s438 + $0x4e] sm:$0x3] %vm505, %v480
        %546 = vst.msk [vmem:[%s438 + $0x50] sm:$0x3] %vm505, %v481
        %547 = vst.msk [vmem:[%s438 + $0x52] sm:$0x3] %vm505, %v482
        %548 = vst.msk [vmem:[%s438 + $0x54] sm:$0x3] %vm505, %v483
        %549 = vst.msk [vmem:[%s438 + $0x56] sm:$0x3] %vm505, %v484
        %550 = vst.msk [vmem:[%s438 + $0x58] sm:$0x3] %vm505, %v485
        %551 = vst.msk [vmem:[%s438 + $0x5a] sm:$0x3] %vm505, %v486
        %552 = vst.msk [vmem:[%s438 + $0x5c] sm:$0x3] %vm505, %v487
        %553 = vst.msk [vmem:[%s438 + $0x5e] sm:$0x3] %vm505, %v488
        %554 = vst.msk [vmem:[%s438 + $0x60] sm:$0x3] %vm505, %v489
        %555 = vst.msk [vmem:[%s438 + $0x62] sm:$0x3] %vm505, %v490
        %556 = vst.msk [vmem:[%s438 + $0x64] sm:$0x3] %vm505, %v491
        %557 = vst.msk [vmem:[%s438 + $0x66] sm:$0x3] %vm505, %v492
        %558 = vst.msk [vmem:[%s438 + $0x68] sm:$0x3] %vm505, %v493
        %559 = vst.msk [vmem:[%s438 + $0x6a] sm:$0x3] %vm505, %v494
        %560 = vst.msk [vmem:[%s438 + $0x6c] sm:$0x3] %vm505, %v495
        %561 = vst.msk [vmem:[%s438 + $0x6e] sm:$0x3] %vm505, %v496
        %562 = vst.msk [vmem:[%s438 + $0x70] sm:$0x3] %vm505, %v497
        %563 = vst.msk [vmem:[%s438 + $0x72] sm:$0x3] %vm505, %v498
        %564 = vst.msk [vmem:[%s438 + $0x74] sm:$0x3] %vm505, %v499
        %565 = vst.msk [vmem:[%s438 + $0x76] sm:$0x3] %vm505, %v500
        %566 = vst.msk [vmem:[%s438 + $0x78] sm:$0x3] %vm505, %v501
        %567 = vst.msk [vmem:[%s438 + $0x7a] sm:$0x3] %vm505, %v502
        %568 = vst.msk [vmem:[%s438 + $0x7c] sm:$0x3] %vm505, %v503
        %569 = vst.msk [vmem:[%s438 + $0x7e] sm:$0x3] %vm505, %v504
        %s570 = sand.u32 %s73, 1
        %s571 = sand.u32 %s73, 1
        %s572 = smul.addr %s571, 128
        %s573 = scalar_lea.vmem [#allocation3], %s572
        // Predicated region
        $region66: #{tpu_custom_call.1} parent=60 // pred_check
          %p574 = pneg %p83
        $region67: #{tpu_custom_call.1} parent=60 // pred_check_branch
          %576 = sbr.rel (%p574) target = $region69
        $region68: #{tpu_custom_call.1} parent=60 // pred_region
          %s577 = smul.u32 8, %s18
          %s578 = smul.addr %s577, 16
          %s579 = sadd.s32 %s19, %s578
          %s580 = smul.addr %s17, 128
          %s581 = sadd.s32 %s579, %s580
          %s582 = smul.addr %s581, 2
          %s583 = scalar_lea.vmem %s1, %s582
          // Predicated region
          $region70: #{tpu_custom_call.1} parent=68 // pred_check
            _
          $region71: #{tpu_custom_call.1} parent=68 // pred_check_branch
            %585 = sbr.rel (0) target = $region73
          $region72: #{tpu_custom_call.1} parent=68 // pred_region
            // Predicated region
            $region74: #{tpu_custom_call.1} parent=72 // pred_check
              _
            $region75: #{tpu_custom_call.1} parent=72 // pred_check_branch
              %587 = sbr.rel target = $region77
            $region76: #{tpu_custom_call.1} parent=72 // pred_region
              // Predicated region
              $region89: #{tpu_custom_call.1} parent=76 // pred_check
                _
              $region90: #{tpu_custom_call.1} parent=76 // pred_check_branch
                %729 = sbr.rel (0) target = $region92
              $region91: #{tpu_custom_call.1} parent=76 // pred_region
                loop: start=0, step=1, limit=1
                $region93: #{tpu_custom_call.1} parent=91 // loop_pre_header
                  _
                $region94: #{tpu_custom_call.1} parent=91 // loop_header
                  %s731 = sphi 0, %s735
                  %p732 = scmp.ge.s32.totalorder %s731, 1
                  %s736 = sphi %s573, %s573
                  %s737 = sphi %s583, %s583
                $region95: #{tpu_custom_call.1} parent=91 // loop_header_branch
                  %734 = sbr.rel (%p732) target = $region99
                $region96: #{tpu_custom_call.1} parent=91 // loop_body
                  _
                $region97: #{tpu_custom_call.1} parent=91 // loop_footer
                  %s735 = sadd.s32 1, %s731
                $region98: #{tpu_custom_call.1} parent=91 // loop_footer_branch
                  %730 = sbr.rel target = $region94
                $region99: #{tpu_custom_call.1} parent=91 // loop_exit
                  _
                %s739 = ssub.s32 4, 1
                loop: start=0, step=1, limit=1
                $region100: #{tpu_custom_call.1} parent=91 // loop_pre_header
                  _
                $region101: #{tpu_custom_call.1} parent=91 // loop_header
                  %s741 = sphi 0, %s745
                  %p742 = scmp.ge.s32.totalorder %s741, 1
                  %s746 = sphi %s573, %s573
                  %s747 = sphi %s583, %s583
                $region102: #{tpu_custom_call.1} parent=91 // loop_header_branch
                  %744 = sbr.rel (%p742) target = $region106
                $region103: #{tpu_custom_call.1} parent=91 // loop_body
                  %v748 = vld [vmem:[%s746] sm:%s739]
                  %749 = vst [vmem:[%s747] sm:%s739] %v748
                  %v750 = vld [vmem:[%s746 + $0x2] sm:%s739]
                  %751 = vst [vmem:[%s747 + $0x4] sm:%s739] %v750
                  %v752 = vld [vmem:[%s746 + $0x4] sm:%s739]
                  %753 = vst [vmem:[%s747 + $0x8] sm:%s739] %v752
                  %v754 = vld [vmem:[%s746 + $0x6] sm:%s739]
                  %755 = vst [vmem:[%s747 + $0xc] sm:%s739] %v754
                  %v756 = vld [vmem:[%s746 + $0x8] sm:%s739]
                  %757 = vst [vmem:[%s747 + $0x10] sm:%s739] %v756
                  %v758 = vld [vmem:[%s746 + $0xa] sm:%s739]
                  %759 = vst [vmem:[%s747 + $0x14] sm:%s739] %v758
                  %v760 = vld [vmem:[%s746 + $0xc] sm:%s739]
                  %761 = vst [vmem:[%s747 + $0x18] sm:%s739] %v760
                  %v762 = vld [vmem:[%s746 + $0xe] sm:%s739]
                  %763 = vst [vmem:[%s747 + $0x1c] sm:%s739] %v762
                  %v764 = vld [vmem:[%s746 + $0x10] sm:%s739]
                  %765 = vst [vmem:[%s747 + $0x20] sm:%s739] %v764
                  %v766 = vld [vmem:[%s746 + $0x12] sm:%s739]
                  %767 = vst [vmem:[%s747 + $0x24] sm:%s739] %v766
                  %v768 = vld [vmem:[%s746 + $0x14] sm:%s739]
                  %769 = vst [vmem:[%s747 + $0x28] sm:%s739] %v768
                  %v770 = vld [vmem:[%s746 + $0x16] sm:%s739]
                  %771 = vst [vmem:[%s747 + $0x2c] sm:%s739] %v770
                  %v772 = vld [vmem:[%s746 + $0x18] sm:%s739]
                  %773 = vst [vmem:[%s747 + $0x30] sm:%s739] %v772
                  %v774 = vld [vmem:[%s746 + $0x1a] sm:%s739]
                  %775 = vst [vmem:[%s747 + $0x34] sm:%s739] %v774
                  %v776 = vld [vmem:[%s746 + $0x1c] sm:%s739]
                  %777 = vst [vmem:[%s747 + $0x38] sm:%s739] %v776
                  %v778 = vld [vmem:[%s746 + $0x1e] sm:%s739]
                  %779 = vst [vmem:[%s747 + $0x3c] sm:%s739] %v778
                  %v780 = vld [vmem:[%s746 + $0x20] sm:%s739]
                  %781 = vst [vmem:[%s747 + $0x40] sm:%s739] %v780
                  %v782 = vld [vmem:[%s746 + $0x22] sm:%s739]
                  %783 = vst [vmem:[%s747 + $0x44] sm:%s739] %v782
                  %v784 = vld [vmem:[%s746 + $0x24] sm:%s739]
                  %785 = vst [vmem:[%s747 + $0x48] sm:%s739] %v784
                  %v786 = vld [vmem:[%s746 + $0x26] sm:%s739]
                  %787 = vst [vmem:[%s747 + $0x4c] sm:%s739] %v786
                  %v788 = vld [vmem:[%s746 + $0x28] sm:%s739]
                  %789 = vst [vmem:[%s747 + $0x50] sm:%s739] %v788
                  %v790 = vld [vmem:[%s746 + $0x2a] sm:%s739]
                  %791 = vst [vmem:[%s747 + $0x54] sm:%s739] %v790
                  %v792 = vld [vmem:[%s746 + $0x2c] sm:%s739]
                  %793 = vst [vmem:[%s747 + $0x58] sm:%s739] %v792
                  %v794 = vld [vmem:[%s746 + $0x2e] sm:%s739]
                  %795 = vst [vmem:[%s747 + $0x5c] sm:%s739] %v794
                  %v796 = vld [vmem:[%s746 + $0x30] sm:%s739]
                  %797 = vst [vmem:[%s747 + $0x60] sm:%s739] %v796
                  %v798 = vld [vmem:[%s746 + $0x32] sm:%s739]
                  %799 = vst [vmem:[%s747 + $0x64] sm:%s739] %v798
                  %v800 = vld [vmem:[%s746 + $0x34] sm:%s739]
                  %801 = vst [vmem:[%s747 + $0x68] sm:%s739] %v800
                  %v802 = vld [vmem:[%s746 + $0x36] sm:%s739]
                  %803 = vst [vmem:[%s747 + $0x6c] sm:%s739] %v802
                  %v804 = vld [vmem:[%s746 + $0x38] sm:%s739]
                  %805 = vst [vmem:[%s747 + $0x70] sm:%s739] %v804
                  %v806 = vld [vmem:[%s746 + $0x3a] sm:%s739]
                  %807 = vst [vmem:[%s747 + $0x74] sm:%s739] %v806
                  %v808 = vld [vmem:[%s746 + $0x3c] sm:%s739]
                  %809 = vst [vmem:[%s747 + $0x78] sm:%s739] %v808
                  %v810 = vld [vmem:[%s746 + $0x3e] sm:%s739]
                  %811 = vst [vmem:[%s747 + $0x7c] sm:%s739] %v810
                  %v812 = vld [vmem:[%s746 + $0x40] sm:%s739]
                  %813 = vst [vmem:[%s747 + $0x80] sm:%s739] %v812
                  %v814 = vld [vmem:[%s746 + $0x42] sm:%s739]
                  %815 = vst [vmem:[%s747 + $0x84] sm:%s739] %v814
                  %v816 = vld [vmem:[%s746 + $0x44] sm:%s739]
                  %817 = vst [vmem:[%s747 + $0x88] sm:%s739] %v816
                  %v818 = vld [vmem:[%s746 + $0x46] sm:%s739]
                  %819 = vst [vmem:[%s747 + $0x8c] sm:%s739] %v818
                  %v820 = vld [vmem:[%s746 + $0x48] sm:%s739]
                  %821 = vst [vmem:[%s747 + $0x90] sm:%s739] %v820
                  %v822 = vld [vmem:[%s746 + $0x4a] sm:%s739]
                  %823 = vst [vmem:[%s747 + $0x94] sm:%s739] %v822
                  %v824 = vld [vmem:[%s746 + $0x4c] sm:%s739]
                  %825 = vst [vmem:[%s747 + $0x98] sm:%s739] %v824
                  %v826 = vld [vmem:[%s746 + $0x4e] sm:%s739]
                  %827 = vst [vmem:[%s747 + $0x9c] sm:%s739] %v826
                  %v828 = vld [vmem:[%s746 + $0x50] sm:%s739]
                  %829 = vst [vmem:[%s747 + $0xa0] sm:%s739] %v828
                  %v830 = vld [vmem:[%s746 + $0x52] sm:%s739]
                  %831 = vst [vmem:[%s747 + $0xa4] sm:%s739] %v830
                  %v832 = vld [vmem:[%s746 + $0x54] sm:%s739]
                  %833 = vst [vmem:[%s747 + $0xa8] sm:%s739] %v832
                  %v834 = vld [vmem:[%s746 + $0x56] sm:%s739]
                  %835 = vst [vmem:[%s747 + $0xac] sm:%s739] %v834
                  %v836 = vld [vmem:[%s746 + $0x58] sm:%s739]
                  %837 = vst [vmem:[%s747 + $0xb0] sm:%s739] %v836
                  %v838 = vld [vmem:[%s746 + $0x5a] sm:%s739]
                  %839 = vst [vmem:[%s747 + $0xb4] sm:%s739] %v838
                  %v840 = vld [vmem:[%s746 + $0x5c] sm:%s739]
                  %841 = vst [vmem:[%s747 + $0xb8] sm:%s739] %v840
                  %v842 = vld [vmem:[%s746 + $0x5e] sm:%s739]
                  %843 = vst [vmem:[%s747 + $0xbc] sm:%s739] %v842
                  %v844 = vld [vmem:[%s746 + $0x60] sm:%s739]
                  %845 = vst [vmem:[%s747 + $0xc0] sm:%s739] %v844
                  %v846 = vld [vmem:[%s746 + $0x62] sm:%s739]
                  %847 = vst [vmem:[%s747 + $0xc4] sm:%s739] %v846
                  %v848 = vld [vmem:[%s746 + $0x64] sm:%s739]
                  %849 = vst [vmem:[%s747 + $0xc8] sm:%s739] %v848
                  %v850 = vld [vmem:[%s746 + $0x66] sm:%s739]
                  %851 = vst [vmem:[%s747 + $0xcc] sm:%s739] %v850
                  %v852 = vld [vmem:[%s746 + $0x68] sm:%s739]
                  %853 = vst [vmem:[%s747 + $0xd0] sm:%s739] %v852
                  %v854 = vld [vmem:[%s746 + $0x6a] sm:%s739]
                  %855 = vst [vmem:[%s747 + $0xd4] sm:%s739] %v854
                  %v856 = vld [vmem:[%s746 + $0x6c] sm:%s739]
                  %857 = vst [vmem:[%s747 + $0xd8] sm:%s739] %v856
                  %v858 = vld [vmem:[%s746 + $0x6e] sm:%s739]
                  %859 = vst [vmem:[%s747 + $0xdc] sm:%s739] %v858
                  %v860 = vld [vmem:[%s746 + $0x70] sm:%s739]
                  %861 = vst [vmem:[%s747 + $0xe0] sm:%s739] %v860
                  %v862 = vld [vmem:[%s746 + $0x72] sm:%s739]
                  %863 = vst [vmem:[%s747 + $0xe4] sm:%s739] %v862
                  %v864 = vld [vmem:[%s746 + $0x74] sm:%s739]
                  %865 = vst [vmem:[%s747 + $0xe8] sm:%s739] %v864
                  %v866 = vld [vmem:[%s746 + $0x76] sm:%s739]
                  %867 = vst [vmem:[%s747 + $0xec] sm:%s739] %v866
                  %v868 = vld [vmem:[%s746 + $0x78] sm:%s739]
                  %869 = vst [vmem:[%s747 + $0xf0] sm:%s739] %v868
                  %v870 = vld [vmem:[%s746 + $0x7a] sm:%s739]
                  %871 = vst [vmem:[%s747 + $0xf4] sm:%s739] %v870
                  %v872 = vld [vmem:[%s746 + $0x7c] sm:%s739]
                  %873 = vst [vmem:[%s747 + $0xf8] sm:%s739] %v872
                  %v874 = vld [vmem:[%s746 + $0x7e] sm:%s739]
                  %875 = vst [vmem:[%s747 + $0xfc] sm:%s739] %v874
                $region104: #{tpu_custom_call.1} parent=91 // loop_footer
                  %s745 = sadd.s32 1, %s741
                $region105: #{tpu_custom_call.1} parent=91 // loop_footer_branch
                  %740 = sbr.rel target = $region101
                $region106: #{tpu_custom_call.1} parent=91 // loop_exit
                  _
              $region92: #{tpu_custom_call.1} parent=76 // pred_fallthru
                _
            $region77: #{tpu_custom_call.1} parent=72 // pred_fallthru
              _
            // Predicated region
            $region78: #{tpu_custom_call.1} parent=72 // pred_check
              _
            $region79: #{tpu_custom_call.1} parent=72 // pred_check_branch
              %589 = sbr.rel (0) target = $region81
            $region80: #{tpu_custom_call.1} parent=72 // pred_region
              %s591 = ssub.s32 4, 1
              loop: start=0, step=1, limit=1
              $region82: #{tpu_custom_call.1} parent=80 // loop_pre_header
                _
              $region83: #{tpu_custom_call.1} parent=80 // loop_header
                %s593 = sphi 0, %s597
                %p594 = scmp.ge.s32.totalorder %s593, 1
                %s598 = sphi %s573, %s573
                %s599 = sphi %s583, %s583
              $region84: #{tpu_custom_call.1} parent=80 // loop_header_branch
                %596 = sbr.rel (%p594) target = $region88
              $region85: #{tpu_custom_call.1} parent=80 // loop_body
                %v600 = vld [vmem:[%s598] sm:%s591]
                %601 = vst [vmem:[%s599] sm:%s591] %v600
                %v602 = vld [vmem:[%s598 + $0x2] sm:%s591]
                %603 = vst [vmem:[%s599 + $0x4] sm:%s591] %v602
                %v604 = vld [vmem:[%s598 + $0x4] sm:%s591]
                %605 = vst [vmem:[%s599 + $0x8] sm:%s591] %v604
                %v606 = vld [vmem:[%s598 + $0x6] sm:%s591]
                %607 = vst [vmem:[%s599 + $0xc] sm:%s591] %v606
                %v608 = vld [vmem:[%s598 + $0x8] sm:%s591]
                %609 = vst [vmem:[%s599 + $0x10] sm:%s591] %v608
                %v610 = vld [vmem:[%s598 + $0xa] sm:%s591]
                %611 = vst [vmem:[%s599 + $0x14] sm:%s591] %v610
                %v612 = vld [vmem:[%s598 + $0xc] sm:%s591]
                %613 = vst [vmem:[%s599 + $0x18] sm:%s591] %v612
                %v614 = vld [vmem:[%s598 + $0xe] sm:%s591]
                %615 = vst [vmem:[%s599 + $0x1c] sm:%s591] %v614
                %v616 = vld [vmem:[%s598 + $0x10] sm:%s591]
                %617 = vst [vmem:[%s599 + $0x20] sm:%s591] %v616
                %v618 = vld [vmem:[%s598 + $0x12] sm:%s591]
                %619 = vst [vmem:[%s599 + $0x24] sm:%s591] %v618
                %v620 = vld [vmem:[%s598 + $0x14] sm:%s591]
                %621 = vst [vmem:[%s599 + $0x28] sm:%s591] %v620
                %v622 = vld [vmem:[%s598 + $0x16] sm:%s591]
                %623 = vst [vmem:[%s599 + $0x2c] sm:%s591] %v622
                %v624 = vld [vmem:[%s598 + $0x18] sm:%s591]
                %625 = vst [vmem:[%s599 + $0x30] sm:%s591] %v624
                %v626 = vld [vmem:[%s598 + $0x1a] sm:%s591]
                %627 = vst [vmem:[%s599 + $0x34] sm:%s591] %v626
                %v628 = vld [vmem:[%s598 + $0x1c] sm:%s591]
                %629 = vst [vmem:[%s599 + $0x38] sm:%s591] %v628
                %v630 = vld [vmem:[%s598 + $0x1e] sm:%s591]
                %631 = vst [vmem:[%s599 + $0x3c] sm:%s591] %v630
                %v632 = vld [vmem:[%s598 + $0x20] sm:%s591]
                %633 = vst [vmem:[%s599 + $0x40] sm:%s591] %v632
                %v634 = vld [vmem:[%s598 + $0x22] sm:%s591]
                %635 = vst [vmem:[%s599 + $0x44] sm:%s591] %v634
                %v636 = vld [vmem:[%s598 + $0x24] sm:%s591]
                %637 = vst [vmem:[%s599 + $0x48] sm:%s591] %v636
                %v638 = vld [vmem:[%s598 + $0x26] sm:%s591]
                %639 = vst [vmem:[%s599 + $0x4c] sm:%s591] %v638
                %v640 = vld [vmem:[%s598 + $0x28] sm:%s591]
                %641 = vst [vmem:[%s599 + $0x50] sm:%s591] %v640
                %v642 = vld [vmem:[%s598 + $0x2a] sm:%s591]
                %643 = vst [vmem:[%s599 + $0x54] sm:%s591] %v642
                %v644 = vld [vmem:[%s598 + $0x2c] sm:%s591]
                %645 = vst [vmem:[%s599 + $0x58] sm:%s591] %v644
                %v646 = vld [vmem:[%s598 + $0x2e] sm:%s591]
                %647 = vst [vmem:[%s599 + $0x5c] sm:%s591] %v646
                %v648 = vld [vmem:[%s598 + $0x30] sm:%s591]
                %649 = vst [vmem:[%s599 + $0x60] sm:%s591] %v648
                %v650 = vld [vmem:[%s598 + $0x32] sm:%s591]
                %651 = vst [vmem:[%s599 + $0x64] sm:%s591] %v650
                %v652 = vld [vmem:[%s598 + $0x34] sm:%s591]
                %653 = vst [vmem:[%s599 + $0x68] sm:%s591] %v652
                %v654 = vld [vmem:[%s598 + $0x36] sm:%s591]
                %655 = vst [vmem:[%s599 + $0x6c] sm:%s591] %v654
                %v656 = vld [vmem:[%s598 + $0x38] sm:%s591]
                %657 = vst [vmem:[%s599 + $0x70] sm:%s591] %v656
                %v658 = vld [vmem:[%s598 + $0x3a] sm:%s591]
                %659 = vst [vmem:[%s599 + $0x74] sm:%s591] %v658
                %v660 = vld [vmem:[%s598 + $0x3c] sm:%s591]
                %661 = vst [vmem:[%s599 + $0x78] sm:%s591] %v660
                %v662 = vld [vmem:[%s598 + $0x3e] sm:%s591]
                %663 = vst [vmem:[%s599 + $0x7c] sm:%s591] %v662
                %v664 = vld [vmem:[%s598 + $0x40] sm:%s591]
                %665 = vst [vmem:[%s599 + $0x80] sm:%s591] %v664
                %v666 = vld [vmem:[%s598 + $0x42] sm:%s591]
                %667 = vst [vmem:[%s599 + $0x84] sm:%s591] %v666
                %v668 = vld [vmem:[%s598 + $0x44] sm:%s591]
                %669 = vst [vmem:[%s599 + $0x88] sm:%s591] %v668
                %v670 = vld [vmem:[%s598 + $0x46] sm:%s591]
                %671 = vst [vmem:[%s599 + $0x8c] sm:%s591] %v670
                %v672 = vld [vmem:[%s598 + $0x48] sm:%s591]
                %673 = vst [vmem:[%s599 + $0x90] sm:%s591] %v672
                %v674 = vld [vmem:[%s598 + $0x4a] sm:%s591]
                %675 = vst [vmem:[%s599 + $0x94] sm:%s591] %v674
                %v676 = vld [vmem:[%s598 + $0x4c] sm:%s591]
                %677 = vst [vmem:[%s599 + $0x98] sm:%s591] %v676
                %v678 = vld [vmem:[%s598 + $0x4e] sm:%s591]
                %679 = vst [vmem:[%s599 + $0x9c] sm:%s591] %v678
                %v680 = vld [vmem:[%s598 + $0x50] sm:%s591]
                %681 = vst [vmem:[%s599 + $0xa0] sm:%s591] %v680
                %v682 = vld [vmem:[%s598 + $0x52] sm:%s591]
                %683 = vst [vmem:[%s599 + $0xa4] sm:%s591] %v682
                %v684 = vld [vmem:[%s598 + $0x54] sm:%s591]
                %685 = vst [vmem:[%s599 + $0xa8] sm:%s591] %v684
                %v686 = vld [vmem:[%s598 + $0x56] sm:%s591]
                %687 = vst [vmem:[%s599 + $0xac] sm:%s591] %v686
                %v688 = vld [vmem:[%s598 + $0x58] sm:%s591]
                %689 = vst [vmem:[%s599 + $0xb0] sm:%s591] %v688
                %v690 = vld [vmem:[%s598 + $0x5a] sm:%s591]
                %691 = vst [vmem:[%s599 + $0xb4] sm:%s591] %v690
                %v692 = vld [vmem:[%s598 + $0x5c] sm:%s591]
                %693 = vst [vmem:[%s599 + $0xb8] sm:%s591] %v692
                %v694 = vld [vmem:[%s598 + $0x5e] sm:%s591]
                %695 = vst [vmem:[%s599 + $0xbc] sm:%s591] %v694
                %v696 = vld [vmem:[%s598 + $0x60] sm:%s591]
                %697 = vst [vmem:[%s599 + $0xc0] sm:%s591] %v696
                %v698 = vld [vmem:[%s598 + $0x62] sm:%s591]
                %699 = vst [vmem:[%s599 + $0xc4] sm:%s591] %v698
                %v700 = vld [vmem:[%s598 + $0x64] sm:%s591]
                %701 = vst [vmem:[%s599 + $0xc8] sm:%s591] %v700
                %v702 = vld [vmem:[%s598 + $0x66] sm:%s591]
                %703 = vst [vmem:[%s599 + $0xcc] sm:%s591] %v702
                %v704 = vld [vmem:[%s598 + $0x68] sm:%s591]
                %705 = vst [vmem:[%s599 + $0xd0] sm:%s591] %v704
                %v706 = vld [vmem:[%s598 + $0x6a] sm:%s591]
                %707 = vst [vmem:[%s599 + $0xd4] sm:%s591] %v706
                %v708 = vld [vmem:[%s598 + $0x6c] sm:%s591]
                %709 = vst [vmem:[%s599 + $0xd8] sm:%s591] %v708
                %v710 = vld [vmem:[%s598 + $0x6e] sm:%s591]
                %711 = vst [vmem:[%s599 + $0xdc] sm:%s591] %v710
                %v712 = vld [vmem:[%s598 + $0x70] sm:%s591]
                %713 = vst [vmem:[%s599 + $0xe0] sm:%s591] %v712
                %v714 = vld [vmem:[%s598 + $0x72] sm:%s591]
                %715 = vst [vmem:[%s599 + $0xe4] sm:%s591] %v714
                %v716 = vld [vmem:[%s598 + $0x74] sm:%s591]
                %717 = vst [vmem:[%s599 + $0xe8] sm:%s591] %v716
                %v718 = vld [vmem:[%s598 + $0x76] sm:%s591]
                %719 = vst [vmem:[%s599 + $0xec] sm:%s591] %v718
                %v720 = vld [vmem:[%s598 + $0x78] sm:%s591]
                %721 = vst [vmem:[%s599 + $0xf0] sm:%s591] %v720
                %v722 = vld [vmem:[%s598 + $0x7a] sm:%s591]
                %723 = vst [vmem:[%s599 + $0xf4] sm:%s591] %v722
                %v724 = vld [vmem:[%s598 + $0x7c] sm:%s591]
                %725 = vst [vmem:[%s599 + $0xf8] sm:%s591] %v724
                %v726 = vld [vmem:[%s598 + $0x7e] sm:%s591]
                %727 = vst [vmem:[%s599 + $0xfc] sm:%s591] %v726
              $region86: #{tpu_custom_call.1} parent=80 // loop_footer
                %s597 = sadd.s32 1, %s593
              $region87: #{tpu_custom_call.1} parent=80 // loop_footer_branch
                %592 = sbr.rel target = $region83
              $region88: #{tpu_custom_call.1} parent=80 // loop_exit
                _
            $region81: #{tpu_custom_call.1} parent=72 // pred_fallthru
              _
          $region73: #{tpu_custom_call.1} parent=68 // pred_fallthru
            _
          %876 = vnop
        $region69: #{tpu_custom_call.1} parent=60 // pred_fallthru
          _
      $region61: #{tpu_custom_call.1} parent=5 // pred_fallthru
        _
      %p877 = scmp.le.s32.totalorder 2, %s7
      // Predicated region
      $region107: #{tpu_custom_call.1} parent=5 // pred_check
        %p878 = pneg %p877
      $region108: #{tpu_custom_call.1} parent=5 // pred_check_branch
        %880 = sbr.rel (%p878) target = $region110
      $region109: #{tpu_custom_call.1} parent=5 // pred_region
        %s881 = ssub.s32 %s7, 2
        // Predicated region
        $region111: #{tpu_custom_call.1} parent=109 // pred_check
          %p882 = pneg %p89
        $region112: #{tpu_custom_call.1} parent=109 // pred_check_branch
          %884 = sbr.rel (%p882) target = $region114
        $region113: #{tpu_custom_call.1} parent=109 // pred_region
          %s885 = sand.u32 %s74, 1
          %s886 = sand.u32 %s74, 1
          %s887 = smul.addr %s886, 128
          %s888 = scalar_lea.vmem [#allocation3], %s887
        $region114: #{tpu_custom_call.1} parent=109 // pred_fallthru
          _
      $region110: #{tpu_custom_call.1} parent=5 // pred_fallthru
        _
    $region6: #{tpu_custom_call.1} parent=1 // loop_footer
      %s11 = sadd.s32 1, %s7
    $region7: #{tpu_custom_call.1} parent=1 // loop_footer_branch
      %6 = sbr.rel target = $region3
    $region8: #{tpu_custom_call.1} parent=1 // loop_exit
      _

</llo_original>
